<compile_context>
chip_gen: v6e
topology: v6e:2x2x1
jax: 0.10.0
libtpu: 0.0.40
codegen_flags: <defaults>
</compile_context>

<pallas_src>
import functools

import jax
import jax.numpy as jnp
from jax.experimental import pallas as pl
from jax.experimental.pallas import tpu as pltpu


def _make_btf_kernel(C, H, W, Cout, Coutp, pad, compute_dtype):
    """Builds the kernel body.

    Refs (in order): x1_ref (1, C, S), x2_ref (1, C, S), w_ref (Coutp, 9*2C),
                     shift_ref (Coutp, 1), o_ref (1, Cout, S),
                     xpad_ref VMEM (2C, pad + S + pad)
    """
    C2 = 2 * C
    S = H * W
    total = pad + S + pad

    def kernel(x1_ref, x2_ref, w_ref, shift_ref, o_ref, xpad_ref):
        # ---- fused concat + pad=1 halo: [zeros | x1 ; x2 | zeros] ------------
        zband = jnp.zeros((C2, pad), compute_dtype)
        xpad_ref[:, 0:pad] = zband                       # left zero border
        xpad_ref[:, pad + S:total] = zband               # right zero border
        xpad_ref[:, pad:pad + S] = jnp.concatenate(
            [x1_ref[0], x2_ref[0]], axis=0).astype(compute_dtype)

        xp = xpad_ref[...]                               # (C2, pad + S + pad)

        # Column-edge validity masks (row wrap of the flattened spatial axis).
        col = jax.lax.broadcasted_iota(jnp.int32, (1, S), 1) % W
        not_first = jnp.broadcast_to(col != 0, (C2, S))        # for dx = -1
        not_last = jnp.broadcast_to(col != (W - 1), (C2, S))   # for dx = +1
        zero = jnp.zeros((C2, S), compute_dtype)

        # Build the 9 shifted tap views and stack them along the K dimension.
        pieces = []
        for dy in (-1, 0, 1):
            for dx in (-1, 0, 1):
                k = dy * W + dx
                xs = xp[:, pad + k:pad + k + S]          # (C2, S) shifted view
                if dx == -1:
                    xs = jnp.where(not_first, xs, zero)
                elif dx == 1:
                    xs = jnp.where(not_last, xs, zero)
                pieces.append(xs)
        xstack = jnp.concatenate(pieces, axis=0)         # (9*C2, S)

        # Single deep MXU matmul over all 9 taps, f32 accumulation.
        # Weights already carry the folded BN scale.
        acc = jnp.dot(w_ref[...], xstack,
                      preferred_element_type=jnp.float32)  # (Coutp, S)

        # Folded-BN shift + ReLU epilogue, then lane-dense store.
        y = jnp.maximum(acc + shift_ref[...], 0.0)
        o_ref[0] = y[0:Cout].astype(o_ref.dtype)

    return kernel


@functools.partial(jax.jit, static_argnames=("eps", "compute_dtype"))
def btf_forward(x1, x2, weight, gamma, beta, running_mean, running_var,
                eps=1e-5, compute_dtype=jnp.float32):
    """BTF.forward(x1, x2).

    x1, x2:  (B, C, H, W)   NCHW, like the PyTorch module
    weight:  (C, 2*C, 3, 3) OIHW conv weight (no bias)
    gamma, beta, running_mean, running_var: (C,) BatchNorm2d params
    compute_dtype: dtype of the MXU operands (bf16 halves VMEM/vreg pressure
                   and doubles MXU rate; f32 default keeps 1e-3 accuracy).
    returns: (B, C, H, W)   NCHW
    """
    B, C, H, W = x1.shape
    S = H * W
    C2 = 2 * C
    Cout = weight.shape[0]
    Coutp = max(8, ((Cout + 7) // 8) * 8)          # pad matmul M to sublanes
    pad = ((W + 1 + 127) // 128) * 128             # lane-aligned halo width

    # Free (bitcast) reshapes - no transpose, no concat, no HBM padding.
    x1r = x1.reshape(B, C, S)
    x2r = x2.reshape(B, C, S)

    # Folded BatchNorm (inference form), kept in f32.
    scale = (gamma / jnp.sqrt(running_var + eps)).astype(jnp.float32)
    shift = (beta - running_mean * scale).astype(jnp.float32)

    # Weight slab: (Coutp, 9*C2), rows = out channel, cols = (tap, in channel).
    # BN scale is folded into the rows so the kernel epilogue is add+relu only.
    w_slab = jnp.transpose(weight, (0, 2, 3, 1)).reshape(Cout, 9 * C2)
    w_slab = w_slab.astype(jnp.float32) * scale[:, None]
    w_slab = jnp.pad(w_slab, ((0, Coutp - Cout), (0, 0))).astype(compute_dtype)
    shift_p = jnp.pad(shift, (0, Coutp - Cout)).reshape(Coutp, 1)

    kernel = _make_btf_kernel(C, H, W, Cout, Coutp, pad, compute_dtype)

    out_flat = pl.pallas_call(
        kernel,
        out_shape=jax.ShapeDtypeStruct((B, Cout, S), x1.dtype),
        grid_spec=pltpu.PrefetchScalarGridSpec(
            num_scalar_prefetch=0,
            grid=(B,),
            in_specs=[
                pl.BlockSpec((1, C, S), lambda b: (b, 0, 0)),        # x1
                pl.BlockSpec((1, C, S), lambda b: (b, 0, 0)),        # x2
                pl.BlockSpec((Coutp, 9 * C2), lambda b: (0, 0)),     # weights
                pl.BlockSpec((Coutp, 1), lambda b: (0, 0)),          # BN shift
            ],
            out_specs=pl.BlockSpec((1, Cout, S), lambda b: (b, 0, 0)),
            scratch_shapes=[pltpu.VMEM((C2, pad + S + pad), compute_dtype)],
        ),
        compiler_params=pltpu.CompilerParams(
            dimension_semantics=("parallel",),
        ),
    )(x1r, x2r, w_slab, shift_p)

    # Free reshape back to NCHW (no transpose needed).
    return out_flat.reshape(B, Cout, H, W)


def _reference(x1, x2, weight, gamma, beta, mean, var, eps=1e-5):
    """Pure-JAX reference (NCHW, matches PyTorch eval mode)."""
    x = jnp.concatenate([x1, x2], axis=1)
    y = jax.lax.conv_general_dilated(
        x, weight, window_strides=(1, 1), padding="SAME",
        dimension_numbers=("NCHW", "OIHW", "NCHW"),
    )
    scale = gamma / jnp.sqrt(var + eps)
    shift = beta - mean * scale
    y = y * scale[None, :, None, None] + shift[None, :, None, None]
    return jnp.maximum(y, 0.0)


if __name__ == "__main__":
    key = jax.random.PRNGKey(0)
    B, C, H, W = 2, 4, 16, 16

    k1, k2, kw, kg, kb, km, kv = jax.random.split(key, 7)
    x1 = jax.random.normal(k1, (B, C, H, W), dtype=jnp.float32)
    x2 = jax.random.normal(k2, (B, C, H, W), dtype=jnp.float32)

    # Deterministic synthetic parameters (ConvBNReLU(2C, C, 3)).
    weight = 0.1 * jax.random.normal(kw, (C, 2 * C, 3, 3), dtype=jnp.float32)
    gamma = 1.0 + 0.1 * jax.random.normal(kg, (C,), dtype=jnp.float32)
    beta = 0.1 * jax.random.normal(kb, (C,), dtype=jnp.float32)
    running_mean = 0.05 * jax.random.normal(km, (C,), dtype=jnp.float32)
    running_var = 1.0 + 0.1 * jax.random.uniform(kv, (C,), dtype=jnp.float32)

    out = btf_forward(x1, x2, weight, gamma, beta, running_mean, running_var)
    out = jax.block_until_ready(out)

    ref = _reference(x1, x2, weight, gamma, beta, running_mean, running_var)
    assert out.shape == (B, C, H, W)
    assert jnp.allclose(out, ref, rtol=1e-3, atol=1e-3), "mismatch vs reference"

    print("KERNEL_OK")
</pallas_src>

<mosaic_0001>
module attributes {stable_mosaic.version = 11 : i64} {
  func.func @kernel(%arg0: i32, %arg1: memref<1x4x256xf32, #tpu.memory_space<vmem>>, %arg2: memref<1x4x256xf32, #tpu.memory_space<vmem>>, %arg3: memref<8x72xf32, #tpu.memory_space<vmem>>, %arg4: memref<8x1xf32, #tpu.memory_space<vmem>>, %arg5: memref<1x4x256xf32, #tpu.memory_space<vmem>>, %arg6: memref<8x512xf32, #tpu.memory_space<vmem>>) attributes {dimension_semantics = [#tpu.dimension_semantics<parallel>], iteration_bounds = array<i64: 2>, scalar_prefetch = 0 : i64, scratch_operands = 1 : i64, tpu.core_type = #tpu.core_type<tc>, window_params = [{transform_indices = @transform_0, window_bounds = array<i64: 1, 4, 256>}, {transform_indices = @transform_1, window_bounds = array<i64: 1, 4, 256>}, {pipeline_mode = #tpu.pipeline_mode<synchronous>, transform_indices = @transform_2, window_bounds = array<i64: 8, 72>}, {pipeline_mode = #tpu.pipeline_mode<synchronous>, transform_indices = @transform_3, window_bounds = array<i64: 8, 1>}, {transform_indices = @transform_4, window_bounds = array<i64: 1, 4, 256>}]} {
    %cst = arith.constant 0.000000e+00 : f32
    %0 = vector.broadcast %cst : f32 to vector<8x128xf32>
    %c0 = arith.constant 0 : index
    %c0_0 = arith.constant 0 : index
    %1 = vector.load %arg6[%c0, %c0_0] : memref<8x512xf32, #tpu.memory_space<vmem>>, vector<8x128xf32>
    tpu.vector_store %arg6[%c0, %c0_0], %0 {strides = array<i32>} : memref<8x512xf32, #tpu.memory_space<vmem>>, vector<8x128xf32>,
    %c0_1 = arith.constant 0 : index
    %c384 = arith.constant 384 : index
    %2 = vector.load %arg6[%c0_1, %c384] : memref<8x512xf32, #tpu.memory_space<vmem>>, vector<8x128xf32>
    tpu.vector_store %arg6[%c0_1, %c384], %0 {strides = array<i32>} : memref<8x512xf32, #tpu.memory_space<vmem>>, vector<8x128xf32>,
    %c0_2 = arith.constant 0 : index
    %c0_3 = arith.constant 0 : index
    %c0_4 = arith.constant 0 : index
    %3 = vector.load %arg1[%c0_2, %c0_3, %c0_4] : memref<1x4x256xf32, #tpu.memory_space<vmem>>, vector<1x4x256xf32>
    %4 = vector.shape_cast %3 : vector<1x4x256xf32> to vector<4x256xf32>
    %c0_5 = arith.constant 0 : index
    %c0_6 = arith.constant 0 : index
    %c0_7 = arith.constant 0 : index
    %5 = vector.load %arg2[%c0_5, %c0_6, %c0_7] : memref<1x4x256xf32, #tpu.memory_space<vmem>>, vector<1x4x256xf32>
    %6 = vector.shape_cast %5 : vector<1x4x256xf32> to vector<4x256xf32>
    %7 = tpu.concatenate %4, %6 in 0 : vector<4x256xf32>, vector<4x256xf32> -> vector<8x256xf32>
    %c0_8 = arith.constant 0 : index
    %c128 = arith.constant 128 : index
    %8 = vector.load %arg6[%c0_8, %c128] : memref<8x512xf32, #tpu.memory_space<vmem>>, vector<8x256xf32>
    tpu.vector_store %arg6[%c0_8, %c128], %7 {strides = array<i32>} : memref<8x512xf32, #tpu.memory_space<vmem>>, vector<8x256xf32>,
    %c0_9 = arith.constant 0 : index
    %c0_10 = arith.constant 0 : index
    %9 = vector.load %arg6[%c0_9, %c0_10] : memref<8x512xf32, #tpu.memory_space<vmem>>, vector<8x512xf32>
    %10 = tpu.iota {dimensions = array<i32: 1>} : vector<1x256xi32>
    %c16_i32 = arith.constant 16 : i32
    %c0_i32 = arith.constant 0 : i32
    %11 = arith.cmpi eq, %c16_i32, %c0_i32 : i32
    %c1_i32 = arith.constant 1 : i32
    %12 = arith.select %11, %c1_i32, %c16_i32 : i32
    %13 = vector.broadcast %12 : i32 to vector<1x256xi32>
    %14 = arith.remsi %10, %13 : vector<1x256xi32>
    %c0_i32_11 = arith.constant 0 : i32
    %15 = vector.broadcast %c0_i32_11 : i32 to vector<1x256xi32>
    %16 = arith.cmpi ne, %14, %15 : vector<1x256xi32>
    %c0_i32_12 = arith.constant 0 : i32
    %17 = vector.broadcast %c0_i32_12 : i32 to vector<1x256xi32>
    %18 = arith.cmpi slt, %14, %17 : vector<1x256xi32>
    %c0_i32_13 = arith.constant 0 : i32
    %19 = arith.cmpi slt, %12, %c0_i32_13 : i32
    %20 = vector.broadcast %19 : i1 to vector<1x256xi1>
    %21 = vector.broadcast %20 : vector<1x256xi1> to vector<1x256xi1>
    %22 = arith.xori %18, %21 : vector<1x256xi1>
    %23 = arith.andi %22, %16 : vector<1x256xi1>
    %24 = vector.broadcast %12 : i32 to vector<1x256xi32>
    %25 = arith.addi %14, %24 : vector<1x256xi32>
    %26 = arith.select %23, %25, %14 : vector<1x256xi1>, vector<1x256xi32>
    %c0_i32_14 = arith.constant 0 : i32
    %27 = vector.broadcast %c0_i32_14 : i32 to vector<1x256xi32>
    %28 = arith.cmpi ne, %26, %27 : vector<1x256xi32>
    %29 = vector.shape_cast %28 : vector<1x256xi1> to vector<1x256xi1>
    %30 = vector.broadcast %29 : vector<1x256xi1> to vector<8x256xi1>
    %c15_i32 = arith.constant 15 : i32
    %31 = vector.broadcast %c15_i32 : i32 to vector<1x256xi32>
    %32 = arith.cmpi ne, %26, %31 : vector<1x256xi32>
    %33 = vector.shape_cast %32 : vector<1x256xi1> to vector<1x256xi1>
    %34 = vector.broadcast %33 : vector<1x256xi1> to vector<8x256xi1>
    %cst_15 = arith.constant 0.000000e+00 : f32
    %35 = vector.broadcast %cst_15 : f32 to vector<8x256xf32>
    %36 = vector.extract_strided_slice %9 {offsets = [0, 111], sizes = [8, 256], strides = [1, 1]} : vector<8x512xf32> to vector<8x256xf32>
    %37 = arith.select %30, %36, %35 : vector<8x256xi1>, vector<8x256xf32>
    %38 = vector.extract_strided_slice %9 {offsets = [0, 112], sizes = [8, 256], strides = [1, 1]} : vector<8x512xf32> to vector<8x256xf32>
    %39 = vector.extract_strided_slice %9 {offsets = [0, 113], sizes = [8, 256], strides = [1, 1]} : vector<8x512xf32> to vector<8x256xf32>
    %40 = arith.select %34, %39, %35 : vector<8x256xi1>, vector<8x256xf32>
    %41 = vector.extract_strided_slice %9 {offsets = [0, 127], sizes = [8, 256], strides = [1, 1]} : vector<8x512xf32> to vector<8x256xf32>
    %42 = arith.select %30, %41, %35 : vector<8x256xi1>, vector<8x256xf32>
    %43 = vector.extract_strided_slice %9 {offsets = [0, 128], sizes = [8, 256], strides = [1, 1]} : vector<8x512xf32> to vector<8x256xf32>
    %44 = vector.extract_strided_slice %9 {offsets = [0, 129], sizes = [8, 256], strides = [1, 1]} : vector<8x512xf32> to vector<8x256xf32>
    %45 = arith.select %34, %44, %35 : vector<8x256xi1>, vector<8x256xf32>
    %46 = vector.extract_strided_slice %9 {offsets = [0, 143], sizes = [8, 256], strides = [1, 1]} : vector<8x512xf32> to vector<8x256xf32>
    %47 = arith.select %30, %46, %35 : vector<8x256xi1>, vector<8x256xf32>
    %48 = vector.extract_strided_slice %9 {offsets = [0, 144], sizes = [8, 256], strides = [1, 1]} : vector<8x512xf32> to vector<8x256xf32>
    %49 = vector.extract_strided_slice %9 {offsets = [0, 145], sizes = [8, 256], strides = [1, 1]} : vector<8x512xf32> to vector<8x256xf32>
    %50 = arith.select %34, %49, %35 : vector<8x256xi1>, vector<8x256xf32>
    %51 = tpu.concatenate %37, %38, %40, %42, %43, %45, %47, %48, %50 in 0 : vector<8x256xf32>, vector<8x256xf32>, vector<8x256xf32>, vector<8x256xf32>, vector<8x256xf32>, vector<8x256xf32>, vector<8x256xf32>, vector<8x256xf32>, vector<8x256xf32> -> vector<72x256xf32>
    %c0_16 = arith.constant 0 : index
    %c0_17 = arith.constant 0 : index
    %52 = vector.load %arg3[%c0_16, %c0_17] : memref<8x72xf32, #tpu.memory_space<vmem>>, vector<8x72xf32>
    %cst_18 = arith.constant dense<0.000000e+00> : vector<8x256xf32>
    %53 = tpu.matmul %52, %51, %cst_18 {dimension_numbers = #tpu.dot_dimension_numbers<[1], [0], [0], [1], [0, 0, 1, 1], [], []>} : vector<8x72xf32>, vector<72x256xf32>, vector<8x256xf32> -> vector<8x256xf32>
    %c0_19 = arith.constant 0 : index
    %c0_20 = arith.constant 0 : index
    %54 = vector.load %arg4[%c0_19, %c0_20] : memref<8x1xf32, #tpu.memory_space<vmem>>, vector<8x1xf32>
    %55 = vector.broadcast %54 : vector<8x1xf32> to vector<8x256xf32>
    %56 = arith.addf %53, %55 : vector<8x256xf32>
    %cst_21 = arith.constant 0.000000e+00 : f32
    %57 = vector.broadcast %cst_21 : f32 to vector<8x256xf32>
    %58 = arith.maximumf %56, %57 : vector<8x256xf32>
    %59 = vector.extract_strided_slice %58 {offsets = [0, 0], sizes = [4, 256], strides = [1, 1]} : vector<8x256xf32> to vector<4x256xf32>
    %c0_22 = arith.constant 0 : index
    %c0_23 = arith.constant 0 : index
    %c0_24 = arith.constant 0 : index
    %60 = vector.load %arg5[%c0_22, %c0_23, %c0_24] : memref<1x4x256xf32, #tpu.memory_space<vmem>>, vector<1x4x256xf32>
    %61 = vector.shape_cast %60 : vector<1x4x256xf32> to vector<4x256xf32>
    %62 = vector.shape_cast %59 : vector<4x256xf32> to vector<1x4x256xf32>
    tpu.vector_store %arg5[%c0_22, %c0_23, %c0_24], %62 {strides = array<i32>} : memref<1x4x256xf32, #tpu.memory_space<vmem>>, vector<1x4x256xf32>,
    return
  }
  func.func @transform_0(%arg0: i32) -> (i32, i32, i32) {
    %c0_i32 = arith.constant 0 : i32
    %c0_i32_0 = arith.constant 0 : i32
    %c0_i32_1 = arith.constant 0 : i32
    return %arg0, %c0_i32, %c0_i32_0 : i32, i32, i32
  }
  func.func @transform_1(%arg0: i32) -> (i32, i32, i32) {
    %c0_i32 = arith.constant 0 : i32
    %c0_i32_0 = arith.constant 0 : i32
    %c0_i32_1 = arith.constant 0 : i32
    return %arg0, %c0_i32, %c0_i32_0 : i32, i32, i32
  }
  func.func @transform_2(%arg0: i32) -> (i32, i32) {
    %c0_i32 = arith.constant 0 : i32
    %c0_i32_0 = arith.constant 0 : i32
    %c0_i32_1 = arith.constant 0 : i32
    return %c0_i32, %c0_i32_0 : i32, i32
  }
  func.func @transform_3(%arg0: i32) -> (i32, i32) {
    %c0_i32 = arith.constant 0 : i32
    %c0_i32_0 = arith.constant 0 : i32
    %c0_i32_1 = arith.constant 0 : i32
    return %c0_i32, %c0_i32_0 : i32, i32
  }
  func.func @transform_4(%arg0: i32) -> (i32, i32, i32) {
    %c0_i32 = arith.constant 0 : i32
    %c0_i32_0 = arith.constant 0 : i32
    %c0_i32_1 = arith.constant 0 : i32
    return %arg0, %c0_i32, %c0_i32_0 : i32, i32, i32
  }
}

</mosaic_0001>

<llo_original>
// kernel: btf_forward.1
$region0: #{btf_forward.1}
  #allocation0 [shape = 'u32[]', space=smem, size = 0x4, offset = 0x4, fixed_abs, tag = 'smem constant byte address 0x4 - core index']
  #allocation1 [shape = 'u32[144,128]{1,0:T(1,128)}', space=vmem, size = 0x12000, scoped, tag = 'internal scratch']
  #allocation2 [shape = 'f32[8,512]{1,0:T(8,128)}', space=vmem, size = 0x4000, scoped, tag = 'scratch operand']
  %s0 = inlined_call_operand.vmem [shape: f32[2,4,256], index: 0, kind: input, shape index: {}]
  %s1 = inlined_call_operand.vmem [shape: f32[2,4,256], index: 1, kind: input, shape index: {}]
  %s2 = inlined_call_operand.vmem [shape: f32[8,72], index: 2, kind: input, shape index: {}]
  %s3 = inlined_call_operand.vmem [shape: f32[8,1], index: 3, kind: input, shape index: {}]
  %s4 = inlined_call_operand.vmem [shape: f32[2,4,256], index: 4, kind: output, shape index: {}]
  %s5 = sld [smem:[#allocation0]]
  $region49: #{btf_forward.1} parent=0
    _
  %s7 = ssub.s32 1, %s5
  %s8 = scalar_select 0, %s7, %s5
  loop: start=0, step=1, limit=4
  $region2: #{btf_forward.1} parent=0 // loop_pre_header
    _
  $region3: #{btf_forward.1} parent=0 // loop_header
    %s10 = sphi 0, %s14
    %p11 = scmp.ge.s32.totalorder %s10, 4
    %s20 = sphi 0, %s22
    %s23 = sphi 0, %s20
    %s24 = sphi 0, %s23
    %s40 = sphi 0, %s24
    %s46 = sphi 0, %s48
    %s49 = sphi 0, %s46
    %s50 = sphi 0, %s49
    %s66 = sphi 0, %s50
    %s70 = sphi 0, %s70
    %s72 = sphi 0, %s70
    %s73 = sphi 0, %s72
    %s87 = sphi 0, %s73
    %s91 = sphi 0, %s91
    %s93 = sphi 0, %s91
    %s94 = sphi 0, %s93
    %s108 = sphi 0, %s94
    %s114 = sphi 0, %s116
    %s117 = sphi 0, %s114
    %s118 = sphi 0, %s117
    %s134 = sphi 0, %s118
  $region4: #{btf_forward.1} parent=0 // loop_header_branch
    %13 = sbr.rel (%p11) target = $region8
  $region5: #{btf_forward.1} parent=0 // loop_body
    %s15 = ssub.s32 %s10, 1
    %s16 = ssub.s32 %s10, 2
    %s17 = sadd.s32 %s10, 1
    %s18 = ssub.s32 %s10, %s17
    %p19 = scmp.eq.s32.totalorder %s18, 0
    %s21 = sadd.s32 %s20, 1
    %s22 = scalar_select %p19, %s20, %s21
    %p25 = pneg %p19
    %p26 = scmp.eq.s32.totalorder %s10, 1
    %p27 = por %p25, %p26
    %p28 = scmp.ne.s32.totalorder %s20, %s23
    %p29 = scmp.eq.s32.totalorder %s10, 0
    %p30 = por %p28, %p29
    %p31 = scmp.ne.s32.totalorder %s20, %s23
    %p32 = scmp.eq.s32.totalorder %s15, 1
    %p33 = por %p31, %p32
    %p34 = scmp.ne.s32.totalorder %s23, %s24
    %p35 = scmp.eq.s32.totalorder %s15, 0
    %p36 = por %p34, %p35
    %p37 = scmp.ne.s32.totalorder %s23, %s24
    %p38 = scmp.eq.s32.totalorder %s16, 1
    %p39 = por %p37, %p38
    %p41 = scmp.ne.s32.totalorder %s24, %s40
    %p42 = scmp.eq.s32.totalorder %s16, 0
    %p43 = por %p41, %p42
    %s44 = ssub.s32 %s10, %s17
    %p45 = scmp.eq.s32.totalorder %s44, 0
    %s47 = sadd.s32 %s46, 1
    %s48 = scalar_select %p45, %s46, %s47
    %p51 = pneg %p45
    %p52 = scmp.eq.s32.totalorder %s10, 1
    %p53 = por %p51, %p52
    %p54 = scmp.ne.s32.totalorder %s46, %s49
    %p55 = scmp.eq.s32.totalorder %s10, 0
    %p56 = por %p54, %p55
    %p57 = scmp.ne.s32.totalorder %s46, %s49
    %p58 = scmp.eq.s32.totalorder %s15, 1
    %p59 = por %p57, %p58
    %p60 = scmp.ne.s32.totalorder %s49, %s50
    %p61 = scmp.eq.s32.totalorder %s15, 0
    %p62 = por %p60, %p61
    %p63 = scmp.ne.s32.totalorder %s49, %s50
    %p64 = scmp.eq.s32.totalorder %s16, 1
    %p65 = por %p63, %p64
    %p67 = scmp.ne.s32.totalorder %s50, %s66
    %p68 = scmp.eq.s32.totalorder %s16, 0
    %p69 = por %p67, %p68
    %s71 = sadd.s32 %s70, 1
    %p74 = scmp.eq.s32.totalorder %s10, 1
    %p75 = scmp.ne.s32.totalorder %s70, %s72
    %p76 = scmp.eq.s32.totalorder %s10, 0
    %p77 = por %p75, %p76
    %p78 = scmp.ne.s32.totalorder %s70, %s72
    %p79 = scmp.eq.s32.totalorder %s15, 1
    %p80 = por %p78, %p79
    %p81 = scmp.ne.s32.totalorder %s72, %s73
    %p82 = scmp.eq.s32.totalorder %s15, 0
    %p83 = por %p81, %p82
    %p84 = scmp.ne.s32.totalorder %s72, %s73
    %p85 = scmp.eq.s32.totalorder %s16, 1
    %p86 = por %p84, %p85
    %p88 = scmp.ne.s32.totalorder %s73, %s87
    %p89 = scmp.eq.s32.totalorder %s16, 0
    %p90 = por %p88, %p89
    %s92 = sadd.s32 %s91, 1
    %p95 = scmp.eq.s32.totalorder %s10, 1
    %p96 = scmp.ne.s32.totalorder %s91, %s93
    %p97 = scmp.eq.s32.totalorder %s10, 0
    %p98 = por %p96, %p97
    %p99 = scmp.ne.s32.totalorder %s91, %s93
    %p100 = scmp.eq.s32.totalorder %s15, 1
    %p101 = por %p99, %p100
    %p102 = scmp.ne.s32.totalorder %s93, %s94
    %p103 = scmp.eq.s32.totalorder %s15, 0
    %p104 = por %p102, %p103
    %p105 = scmp.ne.s32.totalorder %s93, %s94
    %p106 = scmp.eq.s32.totalorder %s16, 1
    %p107 = por %p105, %p106
    %p109 = scmp.ne.s32.totalorder %s94, %s108
    %p110 = scmp.eq.s32.totalorder %s16, 0
    %p111 = por %p109, %p110
    %s112 = ssub.s32 %s10, %s17
    %p113 = scmp.eq.s32.totalorder %s112, 0
    %s115 = sadd.s32 %s114, 1
    %s116 = scalar_select %p113, %s114, %s115
    %p119 = pneg %p113
    %p120 = scmp.eq.s32.totalorder %s10, 1
    %p121 = por %p119, %p120
    %p122 = scmp.ne.s32.totalorder %s114, %s117
    %p123 = scmp.eq.s32.totalorder %s10, 0
    %p124 = por %p122, %p123
    %p125 = scmp.ne.s32.totalorder %s114, %s117
    %p126 = scmp.eq.s32.totalorder %s15, 1
    %p127 = por %p125, %p126
    %p128 = scmp.ne.s32.totalorder %s117, %s118
    %p129 = scmp.eq.s32.totalorder %s15, 0
    %p130 = por %p128, %p129
    %p131 = scmp.ne.s32.totalorder %s117, %s118
    %p132 = scmp.eq.s32.totalorder %s16, 1
    %p133 = por %p131, %p132
    %p135 = scmp.ne.s32.totalorder %s118, %s134
    %p136 = scmp.eq.s32.totalorder %s16, 0
    %p137 = por %p135, %p136
    %p138 = scmp.le.s32.totalorder 1, %s10
    %p139 = scmp.lt.s32.totalorder %s10, 3
    %p140 = pnand %p138, %p139
    %p141 = pneg %p140
    // Predicated region
    $region9: #{btf_forward.1} parent=5 // pred_check
      _
    $region10: #{btf_forward.1} parent=5 // pred_check_branch
      %143 = sbr.rel (%p140) target = $region12
    $region11: #{btf_forward.1} parent=5 // pred_region
      %s144 = ssub.s32 %s10, 1
      // Predicated region
      $region13: #{btf_forward.1} parent=11 // pred_check
        %p145 = pneg %p83
      $region14: #{btf_forward.1} parent=11 // pred_check_branch
        %147 = sbr.rel (%p145) target = $region16
      $region15: #{btf_forward.1} parent=11 // pred_region
        _
      $region16: #{btf_forward.1} parent=11 // pred_fallthru
        _
      // Predicated region
      $region17: #{btf_forward.1} parent=11 // pred_check
        %p148 = pneg %p104
      $region18: #{btf_forward.1} parent=11 // pred_check_branch
        %150 = sbr.rel (%p148) target = $region20
      $region19: #{btf_forward.1} parent=11 // pred_region
        _
      $region20: #{btf_forward.1} parent=11 // pred_fallthru
        _
    $region12: #{btf_forward.1} parent=5 // pred_fallthru
      _
    %p151 = scmp.lt.s32.totalorder %s10, 2
    // Predicated region
    $region21: #{btf_forward.1} parent=5 // pred_check
      %p152 = pneg %p151
    $region22: #{btf_forward.1} parent=5 // pred_check_branch
      %154 = sbr.rel (%p152) target = $region24
    $region23: #{btf_forward.1} parent=5 // pred_region
      // Predicated region
      $region25: #{btf_forward.1} parent=23 // pred_check
        %p155 = pneg %p30
      $region26: #{btf_forward.1} parent=23 // pred_check_branch
        %157 = sbr.rel (%p155) target = $region28
      $region27: #{btf_forward.1} parent=23 // pred_region
        %p158 = scmp.lt.s32.totalorder %s10, 1
        %s159 = scalar_select %p158, %s10, 1
        %s160 = smul.addr %s159, 2
        %s161 = smul.addr %s160, 4
        %s162 = scalar_lea.vmem %s0, %s161
      $region28: #{btf_forward.1} parent=23 // pred_fallthru
        _
      // Predicated region
      $region29: #{btf_forward.1} parent=23 // pred_check
        %p163 = pneg %p56
      $region30: #{btf_forward.1} parent=23 // pred_check_branch
        %165 = sbr.rel (%p163) target = $region32
      $region31: #{btf_forward.1} parent=23 // pred_region
        %p166 = scmp.lt.s32.totalorder %s10, 1
        %s167 = scalar_select %p166, %s10, 1
        %s168 = smul.addr %s167, 2
        %s169 = smul.addr %s168, 4
        %s170 = scalar_lea.vmem %s1, %s169
      $region32: #{btf_forward.1} parent=23 // pred_fallthru
        _
    $region24: #{btf_forward.1} parent=5 // pred_fallthru
      _
    %p171 = scmp.le.s32.totalorder 1, %s10
    %p172 = scmp.lt.s32.totalorder %s10, 3
    %p173 = pnand %p171, %p172
    %p174 = pneg %p173
    // Predicated region
    $region33: #{btf_forward.1} parent=5 // pred_check
      _
    $region34: #{btf_forward.1} parent=5 // pred_check_branch
      %176 = sbr.rel (%p173) target = $region36
    $region35: #{btf_forward.1} parent=5 // pred_region
      %s177 = ssub.s32 %s10, 1
      %p178 = scmp.lt.s32.totalorder %s15, 1
      %s179 = scalar_select %p178, %s15, 1
      %s180 = smul.addr %s179, 2
      %s181 = smul.addr %s180, 4
      %s182 = scalar_lea.vmem %s0, %s181
      %p183 = pneg %p36
      %p184 = pneg %p33
      %p185 = scmp.lt.s32.totalorder %s15, 1
      %s186 = scalar_select %p185, %s15, 1
      %s187 = smul.addr %s186, 2
      %s188 = smul.addr %s187, 4
      %s189 = scalar_lea.vmem %s1, %s188
      %p190 = pneg %p62
      %p191 = pneg %p59
      %p192 = pneg %p83
      %p193 = pneg %p80
      %p194 = pneg %p104
      %p195 = pneg %p101
      %p196 = pneg %p130
      %p197 = pneg %p127
      %p198 = scmp.lt.s32.totalorder %s15, 1
      %s199 = scalar_select %p198, %s15, 1
      %s200 = smul.addr %s199, 2
      %s201 = smul.addr %s200, 4
      %s202 = scalar_lea.vmem %s4, %s201
      %p203 = scmp.lt.s32.totalorder %s15, 1
      %s204 = scalar_select %p203, %s15, 1
      %s205 = smul.addr %s204, 2
      %s206 = smul.addr %s205, 4
      %s207 = scalar_lea.vmem %s0, %s206
      %p208 = scmp.lt.s32.totalorder %s15, 1
      %s209 = scalar_select %p208, %s15, 1
      %s210 = smul.addr %s209, 2
      %s211 = smul.addr %s210, 4
      %s212 = scalar_lea.vmem %s1, %s211
      %p213 = scmp.lt.s32.totalorder %s15, 1
      %s214 = scalar_select %p213, %s15, 1
      %s215 = smul.addr %s214, 2
      %s216 = smul.addr %s215, 4
      %s217 = scalar_lea.vmem %s4, %s216
      %218 = vst [vmem:[#allocation2] sm:$0xff] 0.0
      %219 = vst [vmem:[#allocation2 + $0x18] sm:$0xff] 0.0
      %v220 = vld [vmem:[%s207] sm:$0xff]
      %v221 = vld [vmem:[%s212] sm:$0xff]
      %v223 = vcombine.high %v220, %v220
      %v226 = vcombine.low %v221, %v221
      %vm228 = vcmask 1043456
      %v229 = vsel %vm228, %v220, %v226
      %v230 = vsel %vm228, %v223, %v221
      %231 = vst [vmem:[#allocation2 + $0x8] sm:$0xff] %v229
      %232 = vst [vmem:[#allocation2 + $0x10] sm:$0xff] %v230
      %v233 = vld [vmem:[#allocation2] sm:$0xff]
      %v234 = vld [vmem:[#allocation2 + $0x8] sm:$0xff]
      %v235 = vld [vmem:[#allocation2 + $0x10] sm:$0xff]
      %v236 = vld [vmem:[#allocation2 + $0x18] sm:$0xff]
      %v237 = vlaneseq
      %v238 = vand.u32 %v237, 127
      %v239 = vadd.s32 %v238, 128
      %vm240 = vcmp.lt.s32.totalorder %v238, 0
      %v241 = vsub.s32 0, %v238
      %v242 = vsel %vm240, %v241, %v238
      %v243 = vshrl.u32 %v242, 4
      %v244 = vand.u32 %v242, 15
      %v245 = vsub.s32 0, %v244
      %v246 = vsel %vm240, %v245, %v244
      %vm247 = vcmp.lt.s32.totalorder %v239, 0
      %v248 = vsub.s32 0, %v239
      %v249 = vsel %vm247, %v248, %v239
      %v250 = vshrl.u32 %v249, 4
      %v251 = vand.u32 %v249, 15
      %v252 = vsub.s32 0, %v251
      %v253 = vsel %vm247, %v252, %v251
      %vm254 = vcmp.ne.s32.totalorder %v246, 0
      %vm255 = vcmp.ne.s32.totalorder %v253, 0
      %vm256 = vcmp.lt.s32.totalorder %v246, 0
      %vm257 = vcmp.lt.s32.totalorder %v253, 0
      %vm258 = vmand %vm256, %vm254
      %vm259 = vmand %vm257, %vm255
      %v260 = vadd.s32 %v246, 16
      %v261 = vadd.s32 %v253, 16
      %v262 = vsel %vm258, %v260, %v246
      %v263 = vsel %vm259, %v261, %v253
      %vm264 = vcmp.ne.s32.totalorder %v262, 0
      %vm265 = vcmp.ne.s32.totalorder %v263, 0
      %v266 = vsel %vm264, 1, 0
      %v267 = vsel %vm265, 1, 0
      %vm268 = vcmp.eq.s32.totalorder %v266, 1
      %vm269 = vcmp.eq.s32.totalorder %v267, 1
      %vm270 = vcmp.ne.s32.totalorder %v262, 15
      %vm271 = vcmp.ne.s32.totalorder %v263, 15
      %v272 = vsel %vm270, 1, 0
      %v273 = vsel %vm271, 1, 0
      %vm274 = vcmp.eq.s32.totalorder %v272, 1
      %vm275 = vcmp.eq.s32.totalorder %v273, 1
      %279 = vrot.lane.b32.xlu0 %v233, 17
      %v280 = vpop.permute.xlu0 %279
      %281 = vrot.lane.b32.xlu0 %v234, 17
      %v282 = vpop.permute.xlu0 %281
      %283 = vrot.lane.b32.xlu0 %v235, 17
      %v284 = vpop.permute.xlu0 %283
      %vm285 = vcmask 138240
      %v286 = vsel %vm285, %v280, %v282
      %v287 = vsel %vm285, %v282, %v284
      %v290 = vsel %vm268, %v286, 0.0
      %v291 = vsel %vm269, %v287, 0.0
      %292 = vrot.lane.b32.xlu0 %v233, 15
      %v293 = vpop.permute.xlu0 %292
      %294 = vrot.lane.b32.xlu0 %v234, 15
      %v295 = vpop.permute.xlu0 %294
      %296 = vrot.lane.b32.xlu0 %v235, 15
      %v297 = vpop.permute.xlu0 %296
      %vm298 = vcmask 121856
      %v299 = vsel %vm298, %v293, %v295
      %v300 = vsel %vm298, %v295, %v297
      %v303 = vsel %vm274, %v299, 0.0
      %v304 = vsel %vm275, %v300, 0.0
      %305 = vrot.lane.b32.xlu0 %v233, 1
      %v306 = vpop.permute.xlu0 %305
      %307 = vrot.lane.b32.xlu0 %v234, 1
      %v308 = vpop.permute.xlu0 %307
      %309 = vrot.lane.b32.xlu0 %v235, 1
      %v310 = vpop.permute.xlu0 %309
      %vm311 = vcmask 7168
      %v312 = vsel %vm311, %v306, %v308
      %v313 = vsel %vm311, %v308, %v310
      %v316 = vsel %vm268, %v312, 0.0
      %v317 = vsel %vm269, %v313, 0.0
      %319 = vrot.lane.b32.xlu0 %v234, 127
      %v320 = vpop.permute.xlu0 %319
      %321 = vrot.lane.b32.xlu0 %v235, 127
      %v322 = vpop.permute.xlu0 %321
      %323 = vrot.lane.b32.xlu0 %v236, 127
      %v324 = vpop.permute.xlu0 %323
      %vm325 = vcmask 1039360
      %v326 = vsel %vm325, %v320, %v322
      %v327 = vsel %vm325, %v322, %v324
      %v330 = vsel %vm274, %v326, 0.0
      %v331 = vsel %vm275, %v327, 0.0
      %332 = vrot.lane.b32.xlu0 %v234, 113
      %v333 = vpop.permute.xlu0 %332
      %334 = vrot.lane.b32.xlu0 %v235, 113
      %v335 = vpop.permute.xlu0 %334
      %336 = vrot.lane.b32.xlu0 %v236, 113
      %v337 = vpop.permute.xlu0 %336
      %vm338 = vcmask 924672
      %v339 = vsel %vm338, %v333, %v335
      %v340 = vsel %vm338, %v335, %v337
      %v343 = vsel %vm268, %v339, 0.0
      %v344 = vsel %vm269, %v340, 0.0
      %345 = vrot.lane.b32.xlu0 %v234, 111
      %v346 = vpop.permute.xlu0 %345
      %347 = vrot.lane.b32.xlu0 %v235, 111
      %v348 = vpop.permute.xlu0 %347
      %349 = vrot.lane.b32.xlu0 %v236, 111
      %v350 = vpop.permute.xlu0 %349
      %vm351 = vcmask 908288
      %v352 = vsel %vm351, %v346, %v348
      %v353 = vsel %vm351, %v348, %v350
      %v356 = vsel %vm274, %v352, 0.0
      %v357 = vsel %vm275, %v353, 0.0
      %358 = vrot.lane.b32.xlu0 %v233, 16
      %v359 = vpop.permute.xlu0 %358
      %360 = vrot.lane.b32.xlu0 %v234, 16
      %v361 = vpop.permute.xlu0 %360
      %362 = vrot.lane.b32.xlu0 %v235, 16
      %v363 = vpop.permute.xlu0 %362
      %vm364 = vcmask 130048
      %v365 = vsel %vm364, %v359, %v361
      %v366 = vsel %vm364, %v361, %v363
      %369 = vrot.lane.b32.xlu0 %v234, 112
      %v370 = vpop.permute.xlu0 %369
      %371 = vrot.lane.b32.xlu0 %v235, 112
      %v372 = vpop.permute.xlu0 %371
      %373 = vrot.lane.b32.xlu0 %v236, 112
      %v374 = vpop.permute.xlu0 %373
      %vm375 = vcmask 916480
      %v376 = vsel %vm375, %v370, %v372
      %v377 = vsel %vm375, %v372, %v374
      %v380 = vld [vmem:[%s2] sm:$0xff]
      %v381 = vld [vmem:[%s3] sm:$0xff]
      %383 = vset.pattern.permute.xlu0 0
      %384 = vperm.xlu0 %383, %v381
      %v385 = vpop.permute.xlu0 %384
      %vm387 = vcmask 588800
      %v389 = vsel %vm387, %v380, 0
      %391 = vmatprep.subr.mxu0 0.0
      %392 = vmatpush1.msra.mxu0 0.0
      %393 = vmatprep.subr.mxu0 0.0
      %394 = vmatpush1.msra.mxu0 0.0
      %395 = vmatprep.subr.mxu0 0.0
      %396 = vmatpush1.msra.mxu0 0.0
      %397 = vmatprep.subr.mxu0 0.0
      %398 = vmatpush1.msra.mxu0 0.0
      %399 = vmatprep.subr.mxu0 0.0
      %400 = vmatpush1.msra.mxu0 0.0
      %401 = vmatprep.subr.mxu0 0.0
      %402 = vmatpush1.msra.mxu0 0.0
      %403 = vmatprep.subr.mxu0 0.0
      %404 = vmatpush1.msra.mxu0 0.0
      %405 = vmatprep.subr.mxu0 %v357
      %406 = vmatpush1.msra.mxu0 %v356
      %407 = vmatprep.subr.mxu0 %v377
      %408 = vmatpush1.msra.mxu0 %v376
      %409 = vmatprep.subr.mxu0 %v344
      %410 = vmatpush1.msra.mxu0 %v343
      %411 = vmatprep.subr.mxu0 %v331
      %412 = vmatpush1.msra.mxu0 %v330
      %413 = vmatprep.subr.mxu0 %v235
      %414 = vmatpush1.msra.mxu0 %v234
      %415 = vmatprep.subr.mxu0 %v317
      %416 = vmatpush1.msra.mxu0 %v316
      %417 = vmatprep.subr.mxu0 %v304
      %418 = vmatpush1.msra.mxu0 %v303
      %419 = vmatprep.subr.mxu0 %v366
      %420 = vmatpush1.msra.mxu0 %v365
      %421 = vmatprep.subr.mxu0 %v291
      %422 = vmatpush1.msra.mxu0 %v290
      %423 = vmatprep.subr.mxu0 0.0
      %424 = vmatpush2.msra.mxu0 0.0
      %425 = vmatprep.subr.mxu0 0.0
      %426 = vmatpush2.msra.mxu0 0.0
      %427 = vmatprep.subr.mxu0 0.0
      %428 = vmatpush2.msra.mxu0 0.0
      %429 = vmatprep.subr.mxu0 0.0
      %430 = vmatpush2.msra.mxu0 0.0
      %431 = vmatprep.subr.mxu0 0.0
      %432 = vmatpush2.msra.mxu0 0.0
      %433 = vmatprep.subr.mxu0 0.0
      %434 = vmatpush2.msra.mxu0 0.0
      %435 = vmatprep.subr.mxu0 0.0
      %436 = vmatpush2.msra.mxu0 0.0
      %437 = vmatprep.subr.mxu0 0.0
      %438 = vmatpush2.msra.mxu0 0.0
      %439 = vmatprep.subr.mxu0 0.0
      %440 = vmatpush2.msra.mxu0 0.0
      %441 = vmatprep.subr.mxu0 0.0
      %442 = vmatpush2.msra.mxu0 0.0
      %443 = vmatprep.subr.mxu0 0.0
      %444 = vmatpush2.msra.mxu0 0.0
      %445 = vmatprep.subr.mxu0 0.0
      %446 = vmatpush2.msra.mxu0 0.0
      %447 = vmatprep.subr.mxu0 0.0
      %448 = vmatpush2.msra.mxu0 0.0
      %449 = vmatprep.subr.mxu0 0.0
      %450 = vmatpush2.msra.mxu0 0.0
      %451 = vmatprep.subr.mxu0 0.0
      %452 = vmatpush2.msra.mxu0 0.0
      %453 = vmatprep.subr.mxu0 0.0
      %454 = vmatpush2.msra.mxu0 0.0
      %455 = vmatprep.mubr.f32.mxu0 0.0
      %456 = vmatmul.mubr.f32.gmra.mxu0 %v389
      %v457 = vpop.f32.mrf.mxu0
      %v458 = vadd.f32 %v385, %v457
      %v459 = vpop.f32.mrf.mxu0
      %v460 = vadd.f32 %v385, %v459
      %461 = vdwg.mxu0
      %v462 = vmax.f32 %v458, 0.0
      %v463 = vmax.f32 %v460, 0.0
      %v466 = vcombine.low %v462, %v463
      %468 = vst [vmem:[%s217] sm:$0xff] %v466
      %p469 = scmp.lt.s32.totalorder %s15, 1
      %s470 = scalar_select %p469, %s15, 1
      %s471 = smul.addr %s470, 2
      %s472 = smul.addr %s471, 4
      %s473 = scalar_lea.vmem %s4, %s472
      // Predicated region
      $region37: #{btf_forward.1} parent=35 // pred_check
        %p474 = pneg %p127
      $region38: #{btf_forward.1} parent=35 // pred_check_branch
        %476 = sbr.rel (%p474) target = $region40
      $region39: #{btf_forward.1} parent=35 // pred_region
        _
      $region40: #{btf_forward.1} parent=35 // pred_fallthru
        _
    $region36: #{btf_forward.1} parent=5 // pred_fallthru
      _
    %p477 = scmp.le.s32.totalorder 2, %s10
    // Predicated region
    $region41: #{btf_forward.1} parent=5 // pred_check
      %p478 = pneg %p477
    $region42: #{btf_forward.1} parent=5 // pred_check_branch
      %480 = sbr.rel (%p478) target = $region44
    $region43: #{btf_forward.1} parent=5 // pred_region
      %s481 = ssub.s32 %s10, 2
      // Predicated region
      $region45: #{btf_forward.1} parent=43 // pred_check
        %p482 = pneg %p133
      $region46: #{btf_forward.1} parent=43 // pred_check_branch
        %484 = sbr.rel (%p482) target = $region48
      $region47: #{btf_forward.1} parent=43 // pred_region
        %p485 = scmp.lt.s32.totalorder %s16, 1
        %s486 = scalar_select %p485, %s16, 1
        %s487 = smul.addr %s486, 2
        %s488 = smul.addr %s487, 4
        %s489 = scalar_lea.vmem %s4, %s488
      $region48: #{btf_forward.1} parent=43 // pred_fallthru
        _
    $region44: #{btf_forward.1} parent=5 // pred_fallthru
      _
  $region6: #{btf_forward.1} parent=0 // loop_footer
    %s14 = sadd.s32 1, %s10
  $region7: #{btf_forward.1} parent=0 // loop_footer_branch
    %9 = sbr.rel target = $region3
  $region8: #{btf_forward.1} parent=0 // loop_exit
    _

</llo_original>
